<compile_context>
chip_gen: v6e
topology: v6e:2x2x1
jax: 0.10.0
libtpu: 0.0.40
codegen_flags: <defaults>
</compile_context>

<pallas_src>
import functools

import jax
import jax.numpy as jnp
from jax.experimental import pallas as pl
from jax.experimental.pallas import tpu as pltpu

LN_EPS = 1e-5  # PyTorch nn.LayerNorm default


def _layer_norm(x, gamma, beta):
    mu = jnp.mean(x, axis=-1, keepdims=True)
    var = jnp.mean((x - mu) ** 2, axis=-1, keepdims=True)
    inv = jax.lax.rsqrt(var + LN_EPS)
    return (x - mu) * inv * gamma + beta


def _sab_kernel(x_ref, mattn_ref, mpad_ref,
                ln1_g_ref, ln1_b_ref, ln2_g_ref, ln2_b_ref,
                w1t_ref, b1_ref, w2t_ref, b2_ref,
                *out_refs, block_b, seq_len, emb_dim, compute_dtype, write_attn):
    x = x_ref[...]                                   # (Bt, S, E) f32
    maskf = mattn_ref[...].astype(jnp.float32)       # (Bt, S, S) int8 -> f32
    mpad = mpad_ref[...]                             # (Bt, S, 1) f32

    # ---- scaled dot-product self attention (q = k = v = x) ----
    scale = jnp.float32(1.0 / (emb_dim ** 0.5))
    q = (x * scale).astype(compute_dtype)            # elementwise in f32, cast for MXU
    k = x.astype(compute_dtype)
    # q @ k^T contracting on E (no transposed copy of x is materialized).
    scores = jax.lax.dot_general(
        q, k,
        dimension_numbers=(((2,), (2,)), ((0,), (0,))),
        preferred_element_type=jnp.float32)          # (Bt, S, S) f32
    scores = jnp.where(maskf == 0.0, jnp.float32(-1e9), scores)
    scores = scores - jnp.max(scores, axis=-1, keepdims=True)
    e = jnp.exp(scores)
    attn = e * pl.reciprocal(jnp.sum(e, axis=-1, keepdims=True), approx=True)

    ctx = jax.lax.dot_general(
        attn.astype(compute_dtype), k,
        dimension_numbers=(((2,), (1,)), ((0,), (0,))),
        preferred_element_type=jnp.float32)          # (Bt, S, E) f32

    rows = block_b * seq_len
    a1 = _layer_norm((ctx + x).reshape(rows, emb_dim),
                     ln1_g_ref[...], ln1_b_ref[...])            # (Bt*S, E) f32

    # ---- position-wise FFN (Conv1d k=1 == dense); B folded into M for the MXU ----
    h = jnp.dot(a1.astype(compute_dtype), w1t_ref[...],
                preferred_element_type=jnp.float32) + b1_ref[...]   # (Bt*S, F)
    h = jnp.maximum(h, 0.0)
    f = jnp.dot(h.astype(compute_dtype), w2t_ref[...],
                preferred_element_type=jnp.float32) + b2_ref[...]   # (Bt*S, E)
    f = _layer_norm(f + a1, ln2_g_ref[...], ln2_b_ref[...])

    out_refs[0][...] = f.reshape(block_b, seq_len, emb_dim) * mpad
    if write_attn:
        out_refs[1][...] = attn


def self_attention_block(seq_emb, mask_pad, mask_attn, params, *,
                         block_b=1, compute_dtype=jnp.float32,
                         return_attn=True, vmem_limit_bytes=None):
    """Forward pass of SelfAttentionBlock. Returns (output, attn_weight).

    attn_weight is None when return_attn=False (saves the B*S*S f32 writeback).
    """
    B, S, E = seq_emb.shape
    F = params["w1"].shape[0]
    assert B % block_b == 0, "block_b must divide batch size"

    x = seq_emb.astype(jnp.float32)
    mattn = mask_attn.astype(jnp.int8)                       # 1 byte/elem over HBM
    mpad = mask_pad.astype(jnp.float32).reshape(B, S, 1)

    # Pre-transpose FFN weights once on the host/XLA side (no in-kernel .T).
    w1t = jnp.asarray(params["w1"]).T.astype(compute_dtype)  # (E, F)
    w2t = jnp.asarray(params["w2"]).T.astype(compute_dtype)  # (F, E)

    kernel = functools.partial(
        _sab_kernel, block_b=block_b, seq_len=S, emb_dim=E,
        compute_dtype=compute_dtype, write_attn=return_attn)

    in_specs = [
        pl.BlockSpec((block_b, S, E), lambda b: (b, 0, 0)),   # seq_emb
        pl.BlockSpec((block_b, S, S), lambda b: (b, 0, 0)),   # mask_attn (int8)
        pl.BlockSpec((block_b, S, 1), lambda b: (b, 0, 0)),   # mask_pad
        pl.BlockSpec((1, E), lambda b: (0, 0)),               # ln1 gamma
        pl.BlockSpec((1, E), lambda b: (0, 0)),               # ln1 beta
        pl.BlockSpec((1, E), lambda b: (0, 0)),               # ln2 gamma
        pl.BlockSpec((1, E), lambda b: (0, 0)),               # ln2 beta
        pl.BlockSpec((E, F), lambda b: (0, 0)),               # w1^T
        pl.BlockSpec((1, F), lambda b: (0, 0)),               # b1
        pl.BlockSpec((F, E), lambda b: (0, 0)),               # w2^T
        pl.BlockSpec((1, E), lambda b: (0, 0)),               # b2
    ]
    out_specs = [pl.BlockSpec((block_b, S, E), lambda b: (b, 0, 0))]
    out_shape = [jax.ShapeDtypeStruct((B, S, E), jnp.float32)]
    if return_attn:
        out_specs.append(pl.BlockSpec((block_b, S, S), lambda b: (b, 0, 0)))
        out_shape.append(jax.ShapeDtypeStruct((B, S, S), jnp.float32))

    cp_kwargs = dict(dimension_semantics=("parallel",))
    if vmem_limit_bytes is not None:
        # needed for large-S configs on v5e/v6e (default scoped VMEM is 16/32 MiB)
        cp_kwargs["vmem_limit_bytes"] = vmem_limit_bytes

    results = pl.pallas_call(
        kernel,
        grid=(B // block_b,),
        in_specs=in_specs,
        out_specs=out_specs,
        out_shape=out_shape,
        compiler_params=pltpu.CompilerParams(**cp_kwargs),
    )(
        x, mattn, mpad,
        jnp.asarray(params["ln1_g"]).reshape(1, E).astype(jnp.float32),
        jnp.asarray(params["ln1_b"]).reshape(1, E).astype(jnp.float32),
        jnp.asarray(params["ln2_g"]).reshape(1, E).astype(jnp.float32),
        jnp.asarray(params["ln2_b"]).reshape(1, E).astype(jnp.float32),
        w1t,
        jnp.asarray(params["b1"]).reshape(1, F).astype(jnp.float32),
        w2t,
        jnp.asarray(params["b2"]).reshape(1, E).astype(jnp.float32),
    )
    if return_attn:
        return results[0], results[1]
    return results[0], None


def _reference(seq_emb, mask_pad, mask_attn, params, compute_dtype=jnp.float32):
    """Pure-JAX reference mirroring the PyTorch forward (inference), with the
    same mixed-precision policy as the kernel (matmul operands in compute_dtype,
    f32 accumulation, f32 softmax/LayerNorm)."""
    B, S, E = seq_emb.shape
    x = seq_emb.astype(jnp.float32)
    scale = jnp.float32(1.0 / (E ** 0.5))

    q = (x * scale).astype(compute_dtype)
    k = x.astype(compute_dtype)
    scores = jnp.einsum("bqe,bke->bqk", q, k,
                        preferred_element_type=jnp.float32)
    scores = jnp.where(mask_attn == 0, jnp.float32(-1e9), scores)
    attn = jax.nn.softmax(scores, axis=-1)
    ctx = jnp.einsum("bqk,bke->bqe", attn.astype(compute_dtype), k,
                     preferred_element_type=jnp.float32)

    def ln(v, g, b):
        mu = v.mean(-1, keepdims=True)
        var = ((v - mu) ** 2).mean(-1, keepdims=True)
        return (v - mu) * jax.lax.rsqrt(var + LN_EPS) * g + b

    a = ln(ctx + x, params["ln1_g"], params["ln1_b"])
    h = jnp.einsum("bse,fe->bsf", a.astype(compute_dtype),
                   params["w1"].astype(compute_dtype),
                   preferred_element_type=jnp.float32) + params["b1"]
    h = jax.nn.relu(h)
    f = jnp.einsum("bsf,ef->bse", h.astype(compute_dtype),
                   params["w2"].astype(compute_dtype),
                   preferred_element_type=jnp.float32) + params["b2"]
    f = ln(f + a, params["ln2_g"], params["ln2_b"])
    f = f * mask_pad.astype(jnp.float32)[:, :, None]
    return f, attn


if __name__ == "__main__":
    B, S, E, F = 2, 8, 32, 64

    key = jax.random.PRNGKey(0)
    k_x, k_w1, k_w2, k_b1, k_b2 = jax.random.split(key, 5)

    seq_emb = jax.random.normal(k_x, (B, S, E), dtype=jnp.float32)

    # padding mask: first sequence full, second sequence last 3 positions padded
    mask_pad = jnp.array(
        [[1] * S, [1] * (S - 3) + [0] * 3], dtype=jnp.int32)            # (B, S)
    # causal attention mask combined with key padding
    causal = jnp.tril(jnp.ones((S, S), dtype=jnp.int32))
    mask_attn = causal[None, :, :] * mask_pad[:, None, :]               # (B, S, S)

    params = {
        "ln1_g": jnp.ones((E,), jnp.float32),
        "ln1_b": jnp.zeros((E,), jnp.float32),
        "ln2_g": jnp.ones((E,), jnp.float32),
        "ln2_b": jnp.zeros((E,), jnp.float32),
        "w1": jax.random.normal(k_w1, (F, E), jnp.float32) * 0.05,      # Conv1d(E->F, k=1)
        "b1": jax.random.normal(k_b1, (F,), jnp.float32) * 0.05,
        "w2": jax.random.normal(k_w2, (E, F), jnp.float32) * 0.05,      # Conv1d(F->E, k=1)
        "b2": jax.random.normal(k_b2, (E,), jnp.float32) * 0.05,
    }

    # ---- primary: f32 compute, one batch row per grid step (grid extent 2 ->
    #      both v7x TensorCores get work), attention probs returned (module API).
    out, attn = self_attention_block(
        seq_emb, mask_pad, mask_attn, params,
        block_b=1, compute_dtype=jnp.float32, return_attn=True)
    out = jax.block_until_ready(out)
    attn = jax.block_until_ready(attn)

    ref_out, ref_attn = _reference(seq_emb, mask_pad, mask_attn, params, jnp.float32)
    # tolerance accounts for pl.reciprocal(approx=True) in the softmax normalization
    assert jnp.allclose(out, ref_out, atol=5e-3, rtol=5e-3)
    assert jnp.allclose(attn, ref_attn, atol=5e-3, rtol=5e-3)

    # ---- secondary: bf16 MXU operands, both batch rows in one block (Bt=2),
    #      attention-probability output dropped (no B*S*S writeback).
    out_bf, attn_none = self_attention_block(
        seq_emb, mask_pad, mask_attn, params,
        block_b=2, compute_dtype=jnp.bfloat16, return_attn=False)
    out_bf = jax.block_until_ready(out_bf)
    assert attn_none is None

    ref_bf, _ = _reference(seq_emb, mask_pad, mask_attn, params, jnp.bfloat16)
    assert jnp.allclose(out_bf, ref_bf, atol=5e-3, rtol=5e-3)

    print("KERNEL_OK")
</pallas_src>

<mosaic_0001>
module attributes {stable_mosaic.version = 11 : i64} {
  func.func @_sab_kernel(%arg0: i32, %arg1: memref<1x8x32xf32, #tpu.memory_space<vmem>>, %arg2: memref<1x8x8xi8, #tpu.memory_space<vmem>>, %arg3: memref<1x8x1xf32, #tpu.memory_space<vmem>>, %arg4: memref<1x32xf32, #tpu.memory_space<vmem>>, %arg5: memref<1x32xf32, #tpu.memory_space<vmem>>, %arg6: memref<1x32xf32, #tpu.memory_space<vmem>>, %arg7: memref<1x32xf32, #tpu.memory_space<vmem>>, %arg8: memref<32x64xf32, #tpu.memory_space<vmem>>, %arg9: memref<1x64xf32, #tpu.memory_space<vmem>>, %arg10: memref<64x32xf32, #tpu.memory_space<vmem>>, %arg11: memref<1x32xf32, #tpu.memory_space<vmem>>, %arg12: memref<1x8x32xf32, #tpu.memory_space<vmem>>, %arg13: memref<1x8x8xf32, #tpu.memory_space<vmem>>) attributes {dimension_semantics = [#tpu.dimension_semantics<parallel>], iteration_bounds = array<i64: 2>, scalar_prefetch = 0 : i64, scratch_operands = 0 : i64, tpu.core_type = #tpu.core_type<tc>, window_params = [{transform_indices = @transform_0, window_bounds = array<i64: 1, 8, 32>}, {transform_indices = @transform_1, window_bounds = array<i64: 1, 8, 8>}, {transform_indices = @transform_2, window_bounds = array<i64: 1, 8, 1>}, {pipeline_mode = #tpu.pipeline_mode<synchronous>, transform_indices = @transform_3, window_bounds = array<i64: 1, 32>}, {pipeline_mode = #tpu.pipeline_mode<synchronous>, transform_indices = @transform_4, window_bounds = array<i64: 1, 32>}, {pipeline_mode = #tpu.pipeline_mode<synchronous>, transform_indices = @transform_5, window_bounds = array<i64: 1, 32>}, {pipeline_mode = #tpu.pipeline_mode<synchronous>, transform_indices = @transform_6, window_bounds = array<i64: 1, 32>}, {pipeline_mode = #tpu.pipeline_mode<synchronous>, transform_indices = @transform_7, window_bounds = array<i64: 32, 64>}, {pipeline_mode = #tpu.pipeline_mode<synchronous>, transform_indices = @transform_8, window_bounds = array<i64: 1, 64>}, {pipeline_mode = #tpu.pipeline_mode<synchronous>, transform_indices = @transform_9, window_bounds = array<i64: 64, 32>}, {pipeline_mode = #tpu.pipeline_mode<synchronous>, transform_indices = @transform_10, window_bounds = array<i64: 1, 32>}, {transform_indices = @transform_11, window_bounds = array<i64: 1, 8, 32>}, {transform_indices = @transform_12, window_bounds = array<i64: 1, 8, 8>}]} {
    %c0 = arith.constant 0 : index
    %c0_0 = arith.constant 0 : index
    %c0_1 = arith.constant 0 : index
    %0 = vector.load %arg1[%c0, %c0_0, %c0_1] : memref<1x8x32xf32, #tpu.memory_space<vmem>>, vector<1x8x32xf32>
    %c0_2 = arith.constant 0 : index
    %c0_3 = arith.constant 0 : index
    %c0_4 = arith.constant 0 : index
    %1 = vector.load %arg2[%c0_2, %c0_3, %c0_4] : memref<1x8x8xi8, #tpu.memory_space<vmem>>, vector<1x8x8xi8>
    %2 = arith.sitofp %1 : vector<1x8x8xi8> to vector<1x8x8xf32>
    %c0_5 = arith.constant 0 : index
    %c0_6 = arith.constant 0 : index
    %c0_7 = arith.constant 0 : index
    %3 = vector.load %arg3[%c0_5, %c0_6, %c0_7] : memref<1x8x1xf32, #tpu.memory_space<vmem>>, vector<1x8x1xf32>
    %cst = arith.constant 0.176776692 : f32
    %4 = vector.broadcast %cst : f32 to vector<1x8x32xf32>
    %5 = arith.mulf %0, %4 : vector<1x8x32xf32>
    %cst_8 = arith.constant dense<0.000000e+00> : vector<1x8x8xf32>
    %6 = tpu.matmul %5, %0, %cst_8 {dimension_numbers = #tpu.dot_dimension_numbers<[2], [2], [1], [1], [0, 0, 0, 1, 1, 1], [0], [0]>} : vector<1x8x32xf32>, vector<1x8x32xf32>, vector<1x8x8xf32> -> vector<1x8x8xf32>
    %cst_9 = arith.constant 0.000000e+00 : f32
    %7 = vector.broadcast %cst_9 : f32 to vector<1x8x8xf32>
    %8 = arith.cmpf oeq, %2, %7 : vector<1x8x8xf32>
    %cst_10 = arith.constant -1.000000e+09 : f32
    %9 = vector.broadcast %cst_10 : f32 to vector<1x8x8xf32>
    %10 = arith.select %8, %9, %6 : vector<1x8x8xi1>, vector<1x8x8xf32>
    %cst_11 = arith.constant dense<0xFF800000> : vector<1x8xf32>
    %11 = vector.multi_reduction <maximumf>, %10, %cst_11 [2] : vector<1x8x8xf32> to vector<1x8xf32>
    %12 = vector.shape_cast %11 : vector<1x8xf32> to vector<1x8x1xf32>
    %13 = vector.broadcast %12 : vector<1x8x1xf32> to vector<1x8x8xf32>
    %14 = arith.subf %10, %13 : vector<1x8x8xf32>
    %15 = math.exp %14 : vector<1x8x8xf32>
    %cst_12 = arith.constant dense<0.000000e+00> : vector<1x8xf32>
    %16 = vector.multi_reduction <add>, %15, %cst_12 [2] : vector<1x8x8xf32> to vector<1x8xf32>
    %17 = vector.shape_cast %16 : vector<1x8xf32> to vector<1x8x1xf32>
    %18 = tpu.reciprocal %17 {approx = true} : vector<1x8x1xf32> -> vector<1x8x1xf32>
    %19 = vector.broadcast %18 : vector<1x8x1xf32> to vector<1x8x8xf32>
    %20 = arith.mulf %15, %19 : vector<1x8x8xf32>
    %cst_13 = arith.constant dense<0.000000e+00> : vector<1x8x32xf32>
    %21 = tpu.matmul %20, %0, %cst_13 {dimension_numbers = #tpu.dot_dimension_numbers<[2], [1], [1], [2], [0, 0, 0, 1, 1, 2], [0], [0]>} : vector<1x8x8xf32>, vector<1x8x32xf32>, vector<1x8x32xf32> -> vector<1x8x32xf32>
    %22 = arith.addf %21, %0 : vector<1x8x32xf32>
    %23 = vector.shape_cast %22 : vector<1x8x32xf32> to vector<8x32xf32>
    %c0_14 = arith.constant 0 : index
    %c0_15 = arith.constant 0 : index
    %24 = vector.load %arg4[%c0_14, %c0_15] : memref<1x32xf32, #tpu.memory_space<vmem>>, vector<1x32xf32>
    %c0_16 = arith.constant 0 : index
    %c0_17 = arith.constant 0 : index
    %25 = vector.load %arg5[%c0_16, %c0_17] : memref<1x32xf32, #tpu.memory_space<vmem>>, vector<1x32xf32>
    %cst_18 = arith.constant dense<0.000000e+00> : vector<8xf32>
    %26 = vector.multi_reduction <add>, %23, %cst_18 [1] : vector<8x32xf32> to vector<8xf32>
    %27 = vector.shape_cast %26 : vector<8xf32> to vector<8x1xf32>
    %cst_19 = arith.constant 3.200000e+01 : f32
    %28 = vector.broadcast %cst_19 : f32 to vector<8x1xf32>
    %29 = arith.divf %27, %28 : vector<8x1xf32>
    %30 = vector.broadcast %29 : vector<8x1xf32> to vector<8x32xf32>
    %31 = arith.subf %23, %30 : vector<8x32xf32>
    %32 = arith.mulf %31, %31 : vector<8x32xf32>
    %cst_20 = arith.constant dense<0.000000e+00> : vector<8xf32>
    %33 = vector.multi_reduction <add>, %32, %cst_20 [1] : vector<8x32xf32> to vector<8xf32>
    %34 = vector.shape_cast %33 : vector<8xf32> to vector<8x1xf32>
    %cst_21 = arith.constant 3.200000e+01 : f32
    %35 = vector.broadcast %cst_21 : f32 to vector<8x1xf32>
    %36 = arith.divf %34, %35 : vector<8x1xf32>
    %cst_22 = arith.constant 9.99999974E-6 : f32
    %37 = vector.broadcast %cst_22 : f32 to vector<8x1xf32>
    %38 = arith.addf %36, %37 : vector<8x1xf32>
    %39 = math.rsqrt %38 : vector<8x1xf32>
    %40 = vector.broadcast %29 : vector<8x1xf32> to vector<8x32xf32>
    %41 = arith.subf %23, %40 : vector<8x32xf32>
    %42 = vector.broadcast %39 : vector<8x1xf32> to vector<8x32xf32>
    %43 = arith.mulf %41, %42 : vector<8x32xf32>
    %44 = vector.broadcast %24 : vector<1x32xf32> to vector<8x32xf32>
    %45 = arith.mulf %43, %44 : vector<8x32xf32>
    %46 = vector.broadcast %25 : vector<1x32xf32> to vector<8x32xf32>
    %47 = arith.addf %45, %46 : vector<8x32xf32>
    %c0_23 = arith.constant 0 : index
    %c0_24 = arith.constant 0 : index
    %48 = vector.load %arg8[%c0_23, %c0_24] : memref<32x64xf32, #tpu.memory_space<vmem>>, vector<32x64xf32>
    %cst_25 = arith.constant dense<0.000000e+00> : vector<8x64xf32>
    %49 = tpu.matmul %47, %48, %cst_25 {dimension_numbers = #tpu.dot_dimension_numbers<[1], [0], [0], [1], [0, 0, 1, 1], [], []>} : vector<8x32xf32>, vector<32x64xf32>, vector<8x64xf32> -> vector<8x64xf32>
    %c0_26 = arith.constant 0 : index
    %c0_27 = arith.constant 0 : index
    %50 = vector.load %arg9[%c0_26, %c0_27] : memref<1x64xf32, #tpu.memory_space<vmem>>, vector<1x64xf32>
    %51 = vector.broadcast %50 : vector<1x64xf32> to vector<8x64xf32>
    %52 = arith.addf %49, %51 : vector<8x64xf32>
    %cst_28 = arith.constant 0.000000e+00 : f32
    %53 = vector.broadcast %cst_28 : f32 to vector<8x64xf32>
    %54 = arith.maximumf %52, %53 : vector<8x64xf32>
    %c0_29 = arith.constant 0 : index
    %c0_30 = arith.constant 0 : index
    %55 = vector.load %arg10[%c0_29, %c0_30] : memref<64x32xf32, #tpu.memory_space<vmem>>, vector<64x32xf32>
    %cst_31 = arith.constant dense<0.000000e+00> : vector<8x32xf32>
    %56 = tpu.matmul %54, %55, %cst_31 {dimension_numbers = #tpu.dot_dimension_numbers<[1], [0], [0], [1], [0, 0, 1, 1], [], []>} : vector<8x64xf32>, vector<64x32xf32>, vector<8x32xf32> -> vector<8x32xf32>
    %c0_32 = arith.constant 0 : index
    %c0_33 = arith.constant 0 : index
    %57 = vector.load %arg11[%c0_32, %c0_33] : memref<1x32xf32, #tpu.memory_space<vmem>>, vector<1x32xf32>
    %58 = vector.broadcast %57 : vector<1x32xf32> to vector<8x32xf32>
    %59 = arith.addf %56, %58 : vector<8x32xf32>
    %60 = arith.addf %59, %47 : vector<8x32xf32>
    %c0_34 = arith.constant 0 : index
    %c0_35 = arith.constant 0 : index
    %61 = vector.load %arg6[%c0_34, %c0_35] : memref<1x32xf32, #tpu.memory_space<vmem>>, vector<1x32xf32>
    %c0_36 = arith.constant 0 : index
    %c0_37 = arith.constant 0 : index
    %62 = vector.load %arg7[%c0_36, %c0_37] : memref<1x32xf32, #tpu.memory_space<vmem>>, vector<1x32xf32>
    %cst_38 = arith.constant dense<0.000000e+00> : vector<8xf32>
    %63 = vector.multi_reduction <add>, %60, %cst_38 [1] : vector<8x32xf32> to vector<8xf32>
    %64 = vector.shape_cast %63 : vector<8xf32> to vector<8x1xf32>
    %cst_39 = arith.constant 3.200000e+01 : f32
    %65 = vector.broadcast %cst_39 : f32 to vector<8x1xf32>
    %66 = arith.divf %64, %65 : vector<8x1xf32>
    %67 = vector.broadcast %66 : vector<8x1xf32> to vector<8x32xf32>
    %68 = arith.subf %60, %67 : vector<8x32xf32>
    %69 = arith.mulf %68, %68 : vector<8x32xf32>
    %cst_40 = arith.constant dense<0.000000e+00> : vector<8xf32>
    %70 = vector.multi_reduction <add>, %69, %cst_40 [1] : vector<8x32xf32> to vector<8xf32>
    %71 = vector.shape_cast %70 : vector<8xf32> to vector<8x1xf32>
    %cst_41 = arith.constant 3.200000e+01 : f32
    %72 = vector.broadcast %cst_41 : f32 to vector<8x1xf32>
    %73 = arith.divf %71, %72 : vector<8x1xf32>
    %cst_42 = arith.constant 9.99999974E-6 : f32
    %74 = vector.broadcast %cst_42 : f32 to vector<8x1xf32>
    %75 = arith.addf %73, %74 : vector<8x1xf32>
    %76 = math.rsqrt %75 : vector<8x1xf32>
    %77 = vector.broadcast %66 : vector<8x1xf32> to vector<8x32xf32>
    %78 = arith.subf %60, %77 : vector<8x32xf32>
    %79 = vector.broadcast %76 : vector<8x1xf32> to vector<8x32xf32>
    %80 = arith.mulf %78, %79 : vector<8x32xf32>
    %81 = vector.broadcast %61 : vector<1x32xf32> to vector<8x32xf32>
    %82 = arith.mulf %80, %81 : vector<8x32xf32>
    %83 = vector.broadcast %62 : vector<1x32xf32> to vector<8x32xf32>
    %84 = arith.addf %82, %83 : vector<8x32xf32>
    %85 = vector.shape_cast %84 : vector<8x32xf32> to vector<1x8x32xf32>
    %86 = vector.broadcast %3 : vector<1x8x1xf32> to vector<1x8x32xf32>
    %87 = arith.mulf %85, %86 : vector<1x8x32xf32>
    %c0_43 = arith.constant 0 : index
    %c0_44 = arith.constant 0 : index
    %c0_45 = arith.constant 0 : index
    %88 = vector.load %arg12[%c0_43, %c0_44, %c0_45] : memref<1x8x32xf32, #tpu.memory_space<vmem>>, vector<1x8x32xf32>
    tpu.vector_store %arg12[%c0_43, %c0_44, %c0_45], %87 {strides = array<i32>} : memref<1x8x32xf32, #tpu.memory_space<vmem>>, vector<1x8x32xf32>,
    %c0_46 = arith.constant 0 : index
    %c0_47 = arith.constant 0 : index
    %c0_48 = arith.constant 0 : index
    %89 = vector.load %arg13[%c0_46, %c0_47, %c0_48] : memref<1x8x8xf32, #tpu.memory_space<vmem>>, vector<1x8x8xf32>
    tpu.vector_store %arg13[%c0_46, %c0_47, %c0_48], %20 {strides = array<i32>} : memref<1x8x8xf32, #tpu.memory_space<vmem>>, vector<1x8x8xf32>,
    return
  }
  func.func @transform_0(%arg0: i32) -> (i32, i32, i32) {
    %c0_i32 = arith.constant 0 : i32
    %c0_i32_0 = arith.constant 0 : i32
    %c0_i32_1 = arith.constant 0 : i32
    return %arg0, %c0_i32, %c0_i32_0 : i32, i32, i32
  }
  func.func @transform_1(%arg0: i32) -> (i32, i32, i32) {
    %c0_i32 = arith.constant 0 : i32
    %c0_i32_0 = arith.constant 0 : i32
    %c0_i32_1 = arith.constant 0 : i32
    return %arg0, %c0_i32, %c0_i32_0 : i32, i32, i32
  }
  func.func @transform_2(%arg0: i32) -> (i32, i32, i32) {
    %c0_i32 = arith.constant 0 : i32
    %c0_i32_0 = arith.constant 0 : i32
    %c0_i32_1 = arith.constant 0 : i32
    return %arg0, %c0_i32, %c0_i32_0 : i32, i32, i32
  }
  func.func @transform_3(%arg0: i32) -> (i32, i32) {
    %c0_i32 = arith.constant 0 : i32
    %c0_i32_0 = arith.constant 0 : i32
    %c0_i32_1 = arith.constant 0 : i32
    return %c0_i32, %c0_i32_0 : i32, i32
  }
  func.func @transform_4(%arg0: i32) -> (i32, i32) {
    %c0_i32 = arith.constant 0 : i32
    %c0_i32_0 = arith.constant 0 : i32
    %c0_i32_1 = arith.constant 0 : i32
    return %c0_i32, %c0_i32_0 : i32, i32
  }
  func.func @transform_5(%arg0: i32) -> (i32, i32) {
    %c0_i32 = arith.constant 0 : i32
    %c0_i32_0 = arith.constant 0 : i32
    %c0_i32_1 = arith.constant 0 : i32
    return %c0_i32, %c0_i32_0 : i32, i32
  }
  func.func @transform_6(%arg0: i32) -> (i32, i32) {
    %c0_i32 = arith.constant 0 : i32
    %c0_i32_0 = arith.constant 0 : i32
    %c0_i32_1 = arith.constant 0 : i32
    return %c0_i32, %c0_i32_0 : i32, i32
  }
  func.func @transform_7(%arg0: i32) -> (i32, i32) {
    %c0_i32 = arith.constant 0 : i32
    %c0_i32_0 = arith.constant 0 : i32
    %c0_i32_1 = arith.constant 0 : i32
    return %c0_i32, %c0_i32_0 : i32, i32
  }
  func.func @transform_8(%arg0: i32) -> (i32, i32) {
    %c0_i32 = arith.constant 0 : i32
    %c0_i32_0 = arith.constant 0 : i32
    %c0_i32_1 = arith.constant 0 : i32
    return %c0_i32, %c0_i32_0 : i32, i32
  }
  func.func @transform_9(%arg0: i32) -> (i32, i32) {
    %c0_i32 = arith.constant 0 : i32
    %c0_i32_0 = arith.constant 0 : i32
    %c0_i32_1 = arith.constant 0 : i32
    return %c0_i32, %c0_i32_0 : i32, i32
  }
  func.func @transform_10(%arg0: i32) -> (i32, i32) {
    %c0_i32 = arith.constant 0 : i32
    %c0_i32_0 = arith.constant 0 : i32
    %c0_i32_1 = arith.constant 0 : i32
    return %c0_i32, %c0_i32_0 : i32, i32
  }
  func.func @transform_11(%arg0: i32) -> (i32, i32, i32) {
    %c0_i32 = arith.constant 0 : i32
    %c0_i32_0 = arith.constant 0 : i32
    %c0_i32_1 = arith.constant 0 : i32
    return %arg0, %c0_i32, %c0_i32_0 : i32, i32, i32
  }
  func.func @transform_12(%arg0: i32) -> (i32, i32, i32) {
    %c0_i32 = arith.constant 0 : i32
    %c0_i32_0 = arith.constant 0 : i32
    %c0_i32_1 = arith.constant 0 : i32
    return %arg0, %c0_i32, %c0_i32_0 : i32, i32, i32
  }
}

</mosaic_0001>

<llo_original>
// kernel: tpu_custom_call.1
$region0: #{tpu_custom_call.1}
  #allocation0 [shape = 'u32[]', space=smem, size = 0x4, offset = 0x4, fixed_abs, tag = 'smem constant byte address 0x4 - core index']
  #allocation1 [shape = 'u32[144,128]{1,0:T(1,128)}', space=vmem, size = 0x12000, scoped, tag = 'internal scratch']
  %s0 = inlined_call_operand.vmem [shape: f32[2,8,32], index: 0, kind: input, shape index: {}]
  %s1 = inlined_call_operand.vmem [shape: s8[2,8,8], index: 1, kind: input, shape index: {}]
  %s2 = inlined_call_operand.vmem [shape: f32[2,8,1], index: 2, kind: input, shape index: {}]
  %s3 = inlined_call_operand.vmem [shape: f32[1,32], index: 3, kind: input, shape index: {}]
  %s4 = inlined_call_operand.vmem [shape: f32[1,32], index: 4, kind: input, shape index: {}]
  %s5 = inlined_call_operand.vmem [shape: f32[1,32], index: 5, kind: input, shape index: {}]
  %s6 = inlined_call_operand.vmem [shape: f32[1,32], index: 6, kind: input, shape index: {}]
  %s7 = inlined_call_operand.vmem [shape: f32[32,64], index: 7, kind: input, shape index: {}]
  %s8 = inlined_call_operand.vmem [shape: f32[1,64], index: 8, kind: input, shape index: {}]
  %s9 = inlined_call_operand.vmem [shape: f32[64,32], index: 9, kind: input, shape index: {}]
  %s10 = inlined_call_operand.vmem [shape: f32[1,32], index: 10, kind: input, shape index: {}]
  %s11 = inlined_call_operand.hbm [shape: f32[2,8,32], index: 11, kind: output, shape index: {0}]
  %s12 = inlined_call_operand.hbm [shape: f32[2,8,8], index: 12, kind: output, shape index: {1}]
  %13 = xla_tuple %s11, %s12
  %s14 = sld [smem:[#allocation0]]
  $region85: #{tpu_custom_call.1} parent=0
    _
  %s16 = ssub.s32 1, %s14
  %s17 = scalar_select 0, %s16, %s14
  $region1: #{tpu_custom_call.1} parent=0
    #allocation2 [shape = 'u8[8192]{0}', space=vmem, size = 0x2000, scoped, tag = 'output window, operand 0']
    #allocation3 [shape = 's32[2]{0}', space=sflag, size = 0x8, scoped, tag = 'scoped memory for tpu_custom_call.1']
    #allocation4 [shape = 'u8[8192]{0}', space=vmem, size = 0x2000, scoped, tag = 'output window, operand 1']
    #allocation5 [shape = 's32[2]{0}', space=sflag, size = 0x8, scoped, tag = 'scoped memory for tpu_custom_call.1']
    %18 = vsyncpa [#allocation3], 0
    %s19 = scalar_lea.sflag [#allocation3], 1
    %20 = vsyncpa %s19, 0
    %21 = vsyncpa [#allocation5], 0
    %s22 = scalar_lea.sflag [#allocation5], 1
    %23 = vsyncpa %s22, 0
    loop: start=0, step=1, limit=4
    $region2: #{tpu_custom_call.1} parent=1 // loop_pre_header
      _
    $region3: #{tpu_custom_call.1} parent=1 // loop_header
      %s25 = sphi 0, %s29
      %p26 = scmp.ge.s32.totalorder %s25, 4
      %s35 = sphi 0, %s37
      %s38 = sphi 0, %s35
      %s39 = sphi 0, %s38
      %s55 = sphi 0, %s39
      %s61 = sphi 0, %s63
      %s64 = sphi 0, %s61
      %s65 = sphi 0, %s64
      %s81 = sphi 0, %s65
      %s87 = sphi 0, %s89
      %s90 = sphi 0, %s87
      %s91 = sphi 0, %s90
      %s107 = sphi 0, %s91
      %s111 = sphi 0, %s111
      %s113 = sphi 0, %s111
      %s114 = sphi 0, %s113
      %s128 = sphi 0, %s114
      %s132 = sphi 0, %s132
      %s134 = sphi 0, %s132
      %s135 = sphi 0, %s134
      %s149 = sphi 0, %s135
      %s153 = sphi 0, %s153
      %s155 = sphi 0, %s153
      %s156 = sphi 0, %s155
      %s170 = sphi 0, %s156
      %s174 = sphi 0, %s174
      %s176 = sphi 0, %s174
      %s177 = sphi 0, %s176
      %s191 = sphi 0, %s177
      %s195 = sphi 0, %s195
      %s197 = sphi 0, %s195
      %s198 = sphi 0, %s197
      %s212 = sphi 0, %s198
      %s216 = sphi 0, %s216
      %s218 = sphi 0, %s216
      %s219 = sphi 0, %s218
      %s233 = sphi 0, %s219
      %s237 = sphi 0, %s237
      %s239 = sphi 0, %s237
      %s240 = sphi 0, %s239
      %s254 = sphi 0, %s240
      %s258 = sphi 0, %s258
      %s260 = sphi 0, %s258
      %s261 = sphi 0, %s260
      %s275 = sphi 0, %s261
      %s281 = sphi 0, %s283
      %s284 = sphi 0, %s281
      %s285 = sphi 0, %s284
      %s301 = sphi 0, %s285
      %s307 = sphi 0, %s309
      %s310 = sphi 0, %s307
      %s311 = sphi 0, %s310
      %s327 = sphi 0, %s311
    $region4: #{tpu_custom_call.1} parent=1 // loop_header_branch
      %28 = sbr.rel (%p26) target = $region8
    $region5: #{tpu_custom_call.1} parent=1 // loop_body
      %s30 = ssub.s32 %s25, 1
      %s31 = ssub.s32 %s25, 2
      %s32 = sadd.s32 %s25, 1
      %s33 = ssub.s32 %s25, %s32
      %p34 = scmp.eq.s32.totalorder %s33, 0
      %s36 = sadd.s32 %s35, 1
      %s37 = scalar_select %p34, %s35, %s36
      %p40 = pneg %p34
      %p41 = scmp.eq.s32.totalorder %s25, 1
      %p42 = por %p40, %p41
      %p43 = scmp.ne.s32.totalorder %s35, %s38
      %p44 = scmp.eq.s32.totalorder %s25, 0
      %p45 = por %p43, %p44
      %p46 = scmp.ne.s32.totalorder %s35, %s38
      %p47 = scmp.eq.s32.totalorder %s30, 1
      %p48 = por %p46, %p47
      %p49 = scmp.ne.s32.totalorder %s38, %s39
      %p50 = scmp.eq.s32.totalorder %s30, 0
      %p51 = por %p49, %p50
      %p52 = scmp.ne.s32.totalorder %s38, %s39
      %p53 = scmp.eq.s32.totalorder %s31, 1
      %p54 = por %p52, %p53
      %p56 = scmp.ne.s32.totalorder %s39, %s55
      %p57 = scmp.eq.s32.totalorder %s31, 0
      %p58 = por %p56, %p57
      %s59 = ssub.s32 %s25, %s32
      %p60 = scmp.eq.s32.totalorder %s59, 0
      %s62 = sadd.s32 %s61, 1
      %s63 = scalar_select %p60, %s61, %s62
      %p66 = pneg %p60
      %p67 = scmp.eq.s32.totalorder %s25, 1
      %p68 = por %p66, %p67
      %p69 = scmp.ne.s32.totalorder %s61, %s64
      %p70 = scmp.eq.s32.totalorder %s25, 0
      %p71 = por %p69, %p70
      %p72 = scmp.ne.s32.totalorder %s61, %s64
      %p73 = scmp.eq.s32.totalorder %s30, 1
      %p74 = por %p72, %p73
      %p75 = scmp.ne.s32.totalorder %s64, %s65
      %p76 = scmp.eq.s32.totalorder %s30, 0
      %p77 = por %p75, %p76
      %p78 = scmp.ne.s32.totalorder %s64, %s65
      %p79 = scmp.eq.s32.totalorder %s31, 1
      %p80 = por %p78, %p79
      %p82 = scmp.ne.s32.totalorder %s65, %s81
      %p83 = scmp.eq.s32.totalorder %s31, 0
      %p84 = por %p82, %p83
      %s85 = ssub.s32 %s25, %s32
      %p86 = scmp.eq.s32.totalorder %s85, 0
      %s88 = sadd.s32 %s87, 1
      %s89 = scalar_select %p86, %s87, %s88
      %p92 = pneg %p86
      %p93 = scmp.eq.s32.totalorder %s25, 1
      %p94 = por %p92, %p93
      %p95 = scmp.ne.s32.totalorder %s87, %s90
      %p96 = scmp.eq.s32.totalorder %s25, 0
      %p97 = por %p95, %p96
      %p98 = scmp.ne.s32.totalorder %s87, %s90
      %p99 = scmp.eq.s32.totalorder %s30, 1
      %p100 = por %p98, %p99
      %p101 = scmp.ne.s32.totalorder %s90, %s91
      %p102 = scmp.eq.s32.totalorder %s30, 0
      %p103 = por %p101, %p102
      %p104 = scmp.ne.s32.totalorder %s90, %s91
      %p105 = scmp.eq.s32.totalorder %s31, 1
      %p106 = por %p104, %p105
      %p108 = scmp.ne.s32.totalorder %s91, %s107
      %p109 = scmp.eq.s32.totalorder %s31, 0
      %p110 = por %p108, %p109
      %s112 = sadd.s32 %s111, 1
      %p115 = scmp.eq.s32.totalorder %s25, 1
      %p116 = scmp.ne.s32.totalorder %s111, %s113
      %p117 = scmp.eq.s32.totalorder %s25, 0
      %p118 = por %p116, %p117
      %p119 = scmp.ne.s32.totalorder %s111, %s113
      %p120 = scmp.eq.s32.totalorder %s30, 1
      %p121 = por %p119, %p120
      %p122 = scmp.ne.s32.totalorder %s113, %s114
      %p123 = scmp.eq.s32.totalorder %s30, 0
      %p124 = por %p122, %p123
      %p125 = scmp.ne.s32.totalorder %s113, %s114
      %p126 = scmp.eq.s32.totalorder %s31, 1
      %p127 = por %p125, %p126
      %p129 = scmp.ne.s32.totalorder %s114, %s128
      %p130 = scmp.eq.s32.totalorder %s31, 0
      %p131 = por %p129, %p130
      %s133 = sadd.s32 %s132, 1
      %p136 = scmp.eq.s32.totalorder %s25, 1
      %p137 = scmp.ne.s32.totalorder %s132, %s134
      %p138 = scmp.eq.s32.totalorder %s25, 0
      %p139 = por %p137, %p138
      %p140 = scmp.ne.s32.totalorder %s132, %s134
      %p141 = scmp.eq.s32.totalorder %s30, 1
      %p142 = por %p140, %p141
      %p143 = scmp.ne.s32.totalorder %s134, %s135
      %p144 = scmp.eq.s32.totalorder %s30, 0
      %p145 = por %p143, %p144
      %p146 = scmp.ne.s32.totalorder %s134, %s135
      %p147 = scmp.eq.s32.totalorder %s31, 1
      %p148 = por %p146, %p147
      %p150 = scmp.ne.s32.totalorder %s135, %s149
      %p151 = scmp.eq.s32.totalorder %s31, 0
      %p152 = por %p150, %p151
      %s154 = sadd.s32 %s153, 1
      %p157 = scmp.eq.s32.totalorder %s25, 1
      %p158 = scmp.ne.s32.totalorder %s153, %s155
      %p159 = scmp.eq.s32.totalorder %s25, 0
      %p160 = por %p158, %p159
      %p161 = scmp.ne.s32.totalorder %s153, %s155
      %p162 = scmp.eq.s32.totalorder %s30, 1
      %p163 = por %p161, %p162
      %p164 = scmp.ne.s32.totalorder %s155, %s156
      %p165 = scmp.eq.s32.totalorder %s30, 0
      %p166 = por %p164, %p165
      %p167 = scmp.ne.s32.totalorder %s155, %s156
      %p168 = scmp.eq.s32.totalorder %s31, 1
      %p169 = por %p167, %p168
      %p171 = scmp.ne.s32.totalorder %s156, %s170
      %p172 = scmp.eq.s32.totalorder %s31, 0
      %p173 = por %p171, %p172
      %s175 = sadd.s32 %s174, 1
      %p178 = scmp.eq.s32.totalorder %s25, 1
      %p179 = scmp.ne.s32.totalorder %s174, %s176
      %p180 = scmp.eq.s32.totalorder %s25, 0
      %p181 = por %p179, %p180
      %p182 = scmp.ne.s32.totalorder %s174, %s176
      %p183 = scmp.eq.s32.totalorder %s30, 1
      %p184 = por %p182, %p183
      %p185 = scmp.ne.s32.totalorder %s176, %s177
      %p186 = scmp.eq.s32.totalorder %s30, 0
      %p187 = por %p185, %p186
      %p188 = scmp.ne.s32.totalorder %s176, %s177
      %p189 = scmp.eq.s32.totalorder %s31, 1
      %p190 = por %p188, %p189
      %p192 = scmp.ne.s32.totalorder %s177, %s191
      %p193 = scmp.eq.s32.totalorder %s31, 0
      %p194 = por %p192, %p193
      %s196 = sadd.s32 %s195, 1
      %p199 = scmp.eq.s32.totalorder %s25, 1
      %p200 = scmp.ne.s32.totalorder %s195, %s197
      %p201 = scmp.eq.s32.totalorder %s25, 0
      %p202 = por %p200, %p201
      %p203 = scmp.ne.s32.totalorder %s195, %s197
      %p204 = scmp.eq.s32.totalorder %s30, 1
      %p205 = por %p203, %p204
      %p206 = scmp.ne.s32.totalorder %s197, %s198
      %p207 = scmp.eq.s32.totalorder %s30, 0
      %p208 = por %p206, %p207
      %p209 = scmp.ne.s32.totalorder %s197, %s198
      %p210 = scmp.eq.s32.totalorder %s31, 1
      %p211 = por %p209, %p210
      %p213 = scmp.ne.s32.totalorder %s198, %s212
      %p214 = scmp.eq.s32.totalorder %s31, 0
      %p215 = por %p213, %p214
      %s217 = sadd.s32 %s216, 1
      %p220 = scmp.eq.s32.totalorder %s25, 1
      %p221 = scmp.ne.s32.totalorder %s216, %s218
      %p222 = scmp.eq.s32.totalorder %s25, 0
      %p223 = por %p221, %p222
      %p224 = scmp.ne.s32.totalorder %s216, %s218
      %p225 = scmp.eq.s32.totalorder %s30, 1
      %p226 = por %p224, %p225
      %p227 = scmp.ne.s32.totalorder %s218, %s219
      %p228 = scmp.eq.s32.totalorder %s30, 0
      %p229 = por %p227, %p228
      %p230 = scmp.ne.s32.totalorder %s218, %s219
      %p231 = scmp.eq.s32.totalorder %s31, 1
      %p232 = por %p230, %p231
      %p234 = scmp.ne.s32.totalorder %s219, %s233
      %p235 = scmp.eq.s32.totalorder %s31, 0
      %p236 = por %p234, %p235
      %s238 = sadd.s32 %s237, 1
      %p241 = scmp.eq.s32.totalorder %s25, 1
      %p242 = scmp.ne.s32.totalorder %s237, %s239
      %p243 = scmp.eq.s32.totalorder %s25, 0
      %p244 = por %p242, %p243
      %p245 = scmp.ne.s32.totalorder %s237, %s239
      %p246 = scmp.eq.s32.totalorder %s30, 1
      %p247 = por %p245, %p246
      %p248 = scmp.ne.s32.totalorder %s239, %s240
      %p249 = scmp.eq.s32.totalorder %s30, 0
      %p250 = por %p248, %p249
      %p251 = scmp.ne.s32.totalorder %s239, %s240
      %p252 = scmp.eq.s32.totalorder %s31, 1
      %p253 = por %p251, %p252
      %p255 = scmp.ne.s32.totalorder %s240, %s254
      %p256 = scmp.eq.s32.totalorder %s31, 0
      %p257 = por %p255, %p256
      %s259 = sadd.s32 %s258, 1
      %p262 = scmp.eq.s32.totalorder %s25, 1
      %p263 = scmp.ne.s32.totalorder %s258, %s260
      %p264 = scmp.eq.s32.totalorder %s25, 0
      %p265 = por %p263, %p264
      %p266 = scmp.ne.s32.totalorder %s258, %s260
      %p267 = scmp.eq.s32.totalorder %s30, 1
      %p268 = por %p266, %p267
      %p269 = scmp.ne.s32.totalorder %s260, %s261
      %p270 = scmp.eq.s32.totalorder %s30, 0
      %p271 = por %p269, %p270
      %p272 = scmp.ne.s32.totalorder %s260, %s261
      %p273 = scmp.eq.s32.totalorder %s31, 1
      %p274 = por %p272, %p273
      %p276 = scmp.ne.s32.totalorder %s261, %s275
      %p277 = scmp.eq.s32.totalorder %s31, 0
      %p278 = por %p276, %p277
      %s279 = ssub.s32 %s25, %s32
      %p280 = scmp.eq.s32.totalorder %s279, 0
      %s282 = sadd.s32 %s281, 1
      %s283 = scalar_select %p280, %s281, %s282
      %p286 = pneg %p280
      %p287 = scmp.eq.s32.totalorder %s25, 1
      %p288 = por %p286, %p287
      %p289 = scmp.ne.s32.totalorder %s281, %s284
      %p290 = scmp.eq.s32.totalorder %s25, 0
      %p291 = por %p289, %p290
      %p292 = scmp.ne.s32.totalorder %s281, %s284
      %p293 = scmp.eq.s32.totalorder %s30, 1
      %p294 = por %p292, %p293
      %p295 = scmp.ne.s32.totalorder %s284, %s285
      %p296 = scmp.eq.s32.totalorder %s30, 0
      %p297 = por %p295, %p296
      %p298 = scmp.ne.s32.totalorder %s284, %s285
      %p299 = scmp.eq.s32.totalorder %s31, 1
      %p300 = por %p298, %p299
      %p302 = scmp.ne.s32.totalorder %s285, %s301
      %p303 = scmp.eq.s32.totalorder %s31, 0
      %p304 = por %p302, %p303
      %s305 = ssub.s32 %s25, %s32
      %p306 = scmp.eq.s32.totalorder %s305, 0
      %s308 = sadd.s32 %s307, 1
      %s309 = scalar_select %p306, %s307, %s308
      %p312 = pneg %p306
      %p313 = scmp.eq.s32.totalorder %s25, 1
      %p314 = por %p312, %p313
      %p315 = scmp.ne.s32.totalorder %s307, %s310
      %p316 = scmp.eq.s32.totalorder %s25, 0
      %p317 = por %p315, %p316
      %p318 = scmp.ne.s32.totalorder %s307, %s310
      %p319 = scmp.eq.s32.totalorder %s30, 1
      %p320 = por %p318, %p319
      %p321 = scmp.ne.s32.totalorder %s310, %s311
      %p322 = scmp.eq.s32.totalorder %s30, 0
      %p323 = por %p321, %p322
      %p324 = scmp.ne.s32.totalorder %s310, %s311
      %p325 = scmp.eq.s32.totalorder %s31, 1
      %p326 = por %p324, %p325
      %p328 = scmp.ne.s32.totalorder %s311, %s327
      %p329 = scmp.eq.s32.totalorder %s31, 0
      %p330 = por %p328, %p329
      %p331 = scmp.le.s32.totalorder 1, %s25
      %p332 = scmp.lt.s32.totalorder %s25, 3
      %p333 = pnand %p331, %p332
      %p334 = pneg %p333
      // Predicated region
      $region9: #{tpu_custom_call.1} parent=5 // pred_check
        _
      $region10: #{tpu_custom_call.1} parent=5 // pred_check_branch
        %336 = sbr.rel (%p333) target = $region12
      $region11: #{tpu_custom_call.1} parent=5 // pred_region
        %s337 = ssub.s32 %s25, 1
        // Predicated region
        $region13: #{tpu_custom_call.1} parent=11 // pred_check
          %p338 = pneg %p124
        $region14: #{tpu_custom_call.1} parent=11 // pred_check_branch
          %340 = sbr.rel (%p338) target = $region16
        $region15: #{tpu_custom_call.1} parent=11 // pred_region
          _
        $region16: #{tpu_custom_call.1} parent=11 // pred_fallthru
          _
        // Predicated region
        $region17: #{tpu_custom_call.1} parent=11 // pred_check
          %p341 = pneg %p145
        $region18: #{tpu_custom_call.1} parent=11 // pred_check_branch
          %343 = sbr.rel (%p341) target = $region20
        $region19: #{tpu_custom_call.1} parent=11 // pred_region
          _
        $region20: #{tpu_custom_call.1} parent=11 // pred_fallthru
          _
        // Predicated region
        $region21: #{tpu_custom_call.1} parent=11 // pred_check
          %p344 = pneg %p166
        $region22: #{tpu_custom_call.1} parent=11 // pred_check_branch
          %346 = sbr.rel (%p344) target = $region24
        $region23: #{tpu_custom_call.1} parent=11 // pred_region
          _
        $region24: #{tpu_custom_call.1} parent=11 // pred_fallthru
          _
        // Predicated region
        $region25: #{tpu_custom_call.1} parent=11 // pred_check
          %p347 = pneg %p187
        $region26: #{tpu_custom_call.1} parent=11 // pred_check_branch
          %349 = sbr.rel (%p347) target = $region28
        $region27: #{tpu_custom_call.1} parent=11 // pred_region
          _
        $region28: #{tpu_custom_call.1} parent=11 // pred_fallthru
          _
        // Predicated region
        $region29: #{tpu_custom_call.1} parent=11 // pred_check
          %p350 = pneg %p208
        $region30: #{tpu_custom_call.1} parent=11 // pred_check_branch
          %352 = sbr.rel (%p350) target = $region32
        $region31: #{tpu_custom_call.1} parent=11 // pred_region
          _
        $region32: #{tpu_custom_call.1} parent=11 // pred_fallthru
          _
        // Predicated region
        $region33: #{tpu_custom_call.1} parent=11 // pred_check
          %p353 = pneg %p229
        $region34: #{tpu_custom_call.1} parent=11 // pred_check_branch
          %355 = sbr.rel (%p353) target = $region36
        $region35: #{tpu_custom_call.1} parent=11 // pred_region
          _
        $region36: #{tpu_custom_call.1} parent=11 // pred_fallthru
          _
        // Predicated region
        $region37: #{tpu_custom_call.1} parent=11 // pred_check
          %p356 = pneg %p250
        $region38: #{tpu_custom_call.1} parent=11 // pred_check_branch
          %358 = sbr.rel (%p356) target = $region40
        $region39: #{tpu_custom_call.1} parent=11 // pred_region
          _
        $region40: #{tpu_custom_call.1} parent=11 // pred_fallthru
          _
        // Predicated region
        $region41: #{tpu_custom_call.1} parent=11 // pred_check
          %p359 = pneg %p271
        $region42: #{tpu_custom_call.1} parent=11 // pred_check_branch
          %361 = sbr.rel (%p359) target = $region44
        $region43: #{tpu_custom_call.1} parent=11 // pred_region
          _
        $region44: #{tpu_custom_call.1} parent=11 // pred_fallthru
          _
      $region12: #{tpu_custom_call.1} parent=5 // pred_fallthru
        _
      %p362 = scmp.lt.s32.totalorder %s25, 2
      // Predicated region
      $region45: #{tpu_custom_call.1} parent=5 // pred_check
        %p363 = pneg %p362
      $region46: #{tpu_custom_call.1} parent=5 // pred_check_branch
        %365 = sbr.rel (%p363) target = $region48
      $region47: #{tpu_custom_call.1} parent=5 // pred_region
        // Predicated region
        $region49: #{tpu_custom_call.1} parent=47 // pred_check
          %p366 = pneg %p45
        $region50: #{tpu_custom_call.1} parent=47 // pred_check_branch
          %368 = sbr.rel (%p366) target = $region52
        $region51: #{tpu_custom_call.1} parent=47 // pred_region
          %p369 = scmp.lt.s32.totalorder %s25, 1
          %s370 = scalar_select %p369, %s25, 1
          %s371 = smul.addr %s370, 8
          %s372 = scalar_lea.vmem %s0, %s371
        $region52: #{tpu_custom_call.1} parent=47 // pred_fallthru
          _
        // Predicated region
        $region53: #{tpu_custom_call.1} parent=47 // pred_check
          %p373 = pneg %p71
        $region54: #{tpu_custom_call.1} parent=47 // pred_check_branch
          %375 = sbr.rel (%p373) target = $region56
        $region55: #{tpu_custom_call.1} parent=47 // pred_region
          %p376 = scmp.lt.s32.totalorder %s25, 1
          %s377 = scalar_select %p376, %s25, 1
          %s378 = smul.addr %s377, 2
          %s379 = scalar_lea.vmem %s1, %s378
        $region56: #{tpu_custom_call.1} parent=47 // pred_fallthru
          _
        // Predicated region
        $region57: #{tpu_custom_call.1} parent=47 // pred_check
          %p380 = pneg %p97
        $region58: #{tpu_custom_call.1} parent=47 // pred_check_branch
          %382 = sbr.rel (%p380) target = $region60
        $region59: #{tpu_custom_call.1} parent=47 // pred_region
          %p383 = scmp.lt.s32.totalorder %s25, 1
          %s384 = scalar_select %p383, %s25, 1
          %s385 = smul.addr %s384, 8
          %s386 = scalar_lea.vmem %s2, %s385
        $region60: #{tpu_custom_call.1} parent=47 // pred_fallthru
          _
      $region48: #{tpu_custom_call.1} parent=5 // pred_fallthru
        _
      %p387 = scmp.le.s32.totalorder 1, %s25
      %p388 = scmp.lt.s32.totalorder %s25, 3
      %p389 = pnand %p387, %p388
      %p390 = pneg %p389
      // Predicated region
      $region61: #{tpu_custom_call.1} parent=5 // pred_check
        _
      $region62: #{tpu_custom_call.1} parent=5 // pred_check_branch
        %392 = sbr.rel (%p389) target = $region64
      $region63: #{tpu_custom_call.1} parent=5 // pred_region
        %s393 = ssub.s32 %s25, 1
        %p394 = scmp.lt.s32.totalorder %s30, 1
        %s395 = scalar_select %p394, %s30, 1
        %s396 = smul.addr %s395, 8
        %s397 = scalar_lea.vmem %s0, %s396
        %p398 = pneg %p51
        %p399 = pneg %p48
        %p400 = scmp.lt.s32.totalorder %s30, 1
        %s401 = scalar_select %p400, %s30, 1
        %s402 = smul.addr %s401, 2
        %s403 = scalar_lea.vmem %s1, %s402
        %p404 = pneg %p77
        %p405 = pneg %p74
        %p406 = scmp.lt.s32.totalorder %s30, 1
        %s407 = scalar_select %p406, %s30, 1
        %s408 = smul.addr %s407, 8
        %s409 = scalar_lea.vmem %s2, %s408
        %p410 = pneg %p103
        %p411 = pneg %p100
        %p412 = pneg %p124
        %p413 = pneg %p121
        %p414 = pneg %p145
        %p415 = pneg %p142
        %p416 = pneg %p166
        %p417 = pneg %p163
        %p418 = pneg %p187
        %p419 = pneg %p184
        %p420 = pneg %p208
        %p421 = pneg %p205
        %p422 = pneg %p229
        %p423 = pneg %p226
        %p424 = pneg %p250
        %p425 = pneg %p247
        %p426 = pneg %p271
        %p427 = pneg %p268
        %p428 = pneg %p297
        %p429 = pneg %p294
        %s430 = sand.u32 %s284, 1
        %s431 = scalar_lea.sflag [#allocation3], %s430
        %s432 = sand.u32 %s284, 1
        %s433 = smul.addr %s432, 8
        %s434 = scalar_lea.vmem [#allocation2], %s433
        %p435 = pneg %p323
        %p436 = pneg %p320
        %s437 = sand.u32 %s310, 1
        %s438 = scalar_lea.sflag [#allocation5], %s437
        %s439 = sand.u32 %s310, 1
        %s440 = smul.addr %s439, 8
        %s441 = scalar_lea.vmem [#allocation4], %s440
        %p442 = scmp.lt.s32.totalorder %s30, 1
        %s443 = scalar_select %p442, %s30, 1
        %s444 = smul.addr %s443, 8
        %s445 = scalar_lea.vmem %s0, %s444
        %p446 = scmp.lt.s32.totalorder %s30, 1
        %s447 = scalar_select %p446, %s30, 1
        %s448 = smul.addr %s447, 2
        %s449 = scalar_lea.vmem %s1, %s448
        %p450 = scmp.lt.s32.totalorder %s30, 1
        %s451 = scalar_select %p450, %s30, 1
        %s452 = smul.addr %s451, 8
        %s453 = scalar_lea.vmem %s2, %s452
        %v454 = vld [vmem:[%s445] sm:$0xff]
        %v455 = vld [vmem:[%s449] sm:$0x3]
        %v456 = vunpack.c.0.s8 %v455
        %v457 = vcvt.s32.f32 %v456
        %v458 = vld [vmem:[%s453] sm:$0xff]
        %v459 = vmul.f32 %v454, 0.17677669
        %vm460 = vcmask 261120
        %v462 = vsel %vm460, %v459, 0
        %v465 = vsel %vm460, %v454, 0
        %467 = vmatprep.subr.mxu0 0.0
        %468 = vmatpush1.xpose.msra.mxu0 0.0
        %469 = vmatprep.subr.mxu0 0.0
        %470 = vmatpush1.xpose.msra.mxu0 0.0
        %471 = vmatprep.subr.mxu0 0.0
        %472 = vmatpush1.xpose.msra.mxu0 0.0
        %473 = vmatprep.subr.mxu0 0.0
        %474 = vmatpush1.xpose.msra.mxu0 0.0
        %475 = vmatprep.subr.mxu0 0.0
        %476 = vmatpush1.xpose.msra.mxu0 0.0
        %477 = vmatprep.subr.mxu0 0.0
        %478 = vmatpush1.xpose.msra.mxu0 0.0
        %479 = vmatprep.subr.mxu0 0.0
        %480 = vmatpush1.xpose.msra.mxu0 0.0
        %481 = vmatprep.subr.mxu0 0.0
        %482 = vmatpush1.xpose.msra.mxu0 0.0
        %483 = vmatprep.subr.mxu0 0.0
        %484 = vmatpush1.xpose.msra.mxu0 0.0
        %485 = vmatprep.subr.mxu0 0.0
        %486 = vmatpush1.xpose.msra.mxu0 0.0
        %487 = vmatprep.subr.mxu0 0.0
        %488 = vmatpush1.xpose.msra.mxu0 0.0
        %489 = vmatprep.subr.mxu0 0.0
        %490 = vmatpush1.xpose.msra.mxu0 0.0
        %491 = vmatprep.subr.mxu0 0.0
        %492 = vmatpush1.xpose.msra.mxu0 0.0
        %493 = vmatprep.subr.mxu0 0.0
        %494 = vmatpush1.xpose.msra.mxu0 0.0
        %495 = vmatprep.subr.mxu0 0.0
        %496 = vmatpush1.xpose.msra.mxu0 0.0
        %497 = vmatprep.subr.mxu0 0.0
        %498 = vmatpush1.xpose.msra.mxu0 %v465
        %499 = vmatprep.subr.mxu0 0.0
        %500 = vmatpush2.xpose.msra.mxu0 0.0
        %501 = vmatprep.subr.mxu0 0.0
        %502 = vmatpush2.xpose.msra.mxu0 0.0
        %503 = vmatprep.subr.mxu0 0.0
        %504 = vmatpush2.xpose.msra.mxu0 0.0
        %505 = vmatprep.subr.mxu0 0.0
        %506 = vmatpush2.xpose.msra.mxu0 0.0
        %507 = vmatprep.subr.mxu0 0.0
        %508 = vmatpush2.xpose.msra.mxu0 0.0
        %509 = vmatprep.subr.mxu0 0.0
        %510 = vmatpush2.xpose.msra.mxu0 0.0
        %511 = vmatprep.subr.mxu0 0.0
        %512 = vmatpush2.xpose.msra.mxu0 0.0
        %513 = vmatprep.subr.mxu0 0.0
        %514 = vmatpush2.xpose.msra.mxu0 0.0
        %515 = vmatprep.subr.mxu0 0.0
        %516 = vmatpush2.xpose.msra.mxu0 0.0
        %517 = vmatprep.subr.mxu0 0.0
        %518 = vmatpush2.xpose.msra.mxu0 0.0
        %519 = vmatprep.subr.mxu0 0.0
        %520 = vmatpush2.xpose.msra.mxu0 0.0
        %521 = vmatprep.subr.mxu0 0.0
        %522 = vmatpush2.xpose.msra.mxu0 0.0
        %523 = vmatprep.subr.mxu0 0.0
        %524 = vmatpush2.xpose.msra.mxu0 0.0
        %525 = vmatprep.subr.mxu0 0.0
        %526 = vmatpush2.xpose.msra.mxu0 0.0
        %527 = vmatprep.subr.mxu0 0.0
        %528 = vmatpush2.xpose.msra.mxu0 0.0
        %529 = vmatprep.subr.mxu0 0.0
        %530 = vmatpush2.xpose.msra.mxu0 0.0
        %531 = vmatprep.mubr.f32.mxu0 0.0
        %532 = vmatmul.mubr.f32.gmra.mxu0 %v462
        %v533 = vpop.f32.mrf.mxu0
        %v534 = vadd.f32 0.0, %v533
        %v535 = vpop.f32.mrf.mxu0
        %536 = vdwg.mxu0
        %vm537 = vcmp.eq.f32.partialorder %v457, 0.0
        %v538 = vsel %vm537, -1e+09, %v534
        %vm539 = vcmask 64512
        %v540 = vsel %vm539, %v538, -inf
        %541 = vmax.xlane.f32.xlu0 %v540
        %v542 = vpop.xlane.xlu0 %541
        %v543 = vsub.f32 %v538, %v542
        %v544 = vmul.f32 %v543, 1.442695
        %v545 = vpow.pop %v544
        %v546 = vsel %vm539, %v545, 0.0
        %547 = vadd.xlane.f32.xlu0 %v546
        %v548 = vpop.xlane.xlu0 %547
        %v549 = vrcp.pop %v548
        %v550 = vmul.f32 %v545, %v549
        %v552 = vsel %vm539, %v550, 0
        %554 = vmatprep.subr.mxu0 0.0
        %555 = vmatpush1.msra.mxu0 0.0
        %556 = vmatprep.subr.mxu0 0.0
        %557 = vmatpush1.msra.mxu0 0.0
        %558 = vmatprep.subr.mxu0 0.0
        %559 = vmatpush1.msra.mxu0 0.0
        %560 = vmatprep.subr.mxu0 0.0
        %561 = vmatpush1.msra.mxu0 0.0
        %562 = vmatprep.subr.mxu0 0.0
        %563 = vmatpush1.msra.mxu0 0.0
        %564 = vmatprep.subr.mxu0 0.0
        %565 = vmatpush1.msra.mxu0 0.0
        %566 = vmatprep.subr.mxu0 0.0
        %567 = vmatpush1.msra.mxu0 0.0
        %568 = vmatprep.subr.mxu0 0.0
        %569 = vmatpush1.msra.mxu0 0.0
        %570 = vmatprep.subr.mxu0 0.0
        %571 = vmatpush1.msra.mxu0 0.0
        %572 = vmatprep.subr.mxu0 0.0
        %573 = vmatpush1.msra.mxu0 0.0
        %574 = vmatprep.subr.mxu0 0.0
        %575 = vmatpush1.msra.mxu0 0.0
        %576 = vmatprep.subr.mxu0 0.0
        %577 = vmatpush1.msra.mxu0 0.0
        %578 = vmatprep.subr.mxu0 0.0
        %579 = vmatpush1.msra.mxu0 0.0
        %580 = vmatprep.subr.mxu0 0.0
        %581 = vmatpush1.msra.mxu0 0.0
        %582 = vmatprep.subr.mxu0 0.0
        %583 = vmatpush1.msra.mxu0 0.0
        %584 = vmatprep.subr.mxu0 0.0
        %585 = vmatpush1.msra.mxu0 %v454
        %586 = vmatprep.subr.mxu0 0.0
        %587 = vmatpush2.msra.mxu0 0.0
        %588 = vmatprep.subr.mxu0 0.0
        %589 = vmatpush2.msra.mxu0 0.0
        %590 = vmatprep.subr.mxu0 0.0
        %591 = vmatpush2.msra.mxu0 0.0
        %592 = vmatprep.subr.mxu0 0.0
        %593 = vmatpush2.msra.mxu0 0.0
        %594 = vmatprep.subr.mxu0 0.0
        %595 = vmatpush2.msra.mxu0 0.0
        %596 = vmatprep.subr.mxu0 0.0
        %597 = vmatpush2.msra.mxu0 0.0
        %598 = vmatprep.subr.mxu0 0.0
        %599 = vmatpush2.msra.mxu0 0.0
        %600 = vmatprep.subr.mxu0 0.0
        %601 = vmatpush2.msra.mxu0 0.0
        %602 = vmatprep.subr.mxu0 0.0
        %603 = vmatpush2.msra.mxu0 0.0
        %604 = vmatprep.subr.mxu0 0.0
        %605 = vmatpush2.msra.mxu0 0.0
        %606 = vmatprep.subr.mxu0 0.0
        %607 = vmatpush2.msra.mxu0 0.0
        %608 = vmatprep.subr.mxu0 0.0
        %609 = vmatpush2.msra.mxu0 0.0
        %610 = vmatprep.subr.mxu0 0.0
        %611 = vmatpush2.msra.mxu0 0.0
        %612 = vmatprep.subr.mxu0 0.0
        %613 = vmatpush2.msra.mxu0 0.0
        %614 = vmatprep.subr.mxu0 0.0
        %615 = vmatpush2.msra.mxu0 0.0
        %616 = vmatprep.subr.mxu0 0.0
        %617 = vmatpush2.msra.mxu0 0.0
        %618 = vmatprep.mubr.f32.mxu0 0.0
        %619 = vmatmul.mubr.f32.gmra.mxu0 %v552
        %v620 = vpop.f32.mrf.mxu0
        %v621 = vadd.f32 %v454, %v620
        %v622 = vpop.f32.mrf.mxu0
        %623 = vdwg.mxu0
        %v624 = vld [vmem:[%s3] sm:$0x1]
        %v625 = vld [vmem:[%s4] sm:$0x1]
        %v626 = vsel %vm460, %v621, 0.0
        %627 = vadd.xlane.f32.xlu0 %v626
        %v628 = vpop.xlane.xlu0 %627
        %v629 = vrcp.pop 32.0
        %v630 = vmul.f32 %v628, %v629
        %v631 = vsub.f32 %v621, %v630
        %v632 = vmul.f32 %v631, %v631
        %v633 = vsel %vm460, %v632, 0.0
        %634 = vadd.xlane.f32.xlu0 %v633
        %v635 = vpop.xlane.xlu0 %634
        %v636 = vmul.f32 %v635, %v629
        %v637 = vadd.f32 %v636, 1e-05
        %v638 = vrsqrt.pop %v637
        %v639 = vmul.f32 %v631, %v638
        %v641 = vlaneseq
        %v642 = vshrl.u32 %v641, 7
        %v643 = vsub.s32 0, %v642
        %v644 = vrot.slane %v624, %v643
        %v646 = vmul.f32 %v639, %v644
        %v648 = vlaneseq
        %v649 = vshrl.u32 %v648, 7
        %v650 = vsub.s32 0, %v649
        %v651 = vrot.slane %v625, %v650
        %v653 = vadd.f32 %v646, %v651
        %v654 = vld [vmem:[%s7] sm:$0xff]
        %v655 = vld [vmem:[%s7 + $0x8] sm:$0xff]
        %v656 = vld [vmem:[%s7 + $0x10] sm:$0xff]
        %v657 = vld [vmem:[%s7 + $0x18] sm:$0xff]
        %v658 = vld [vmem:[%s8] sm:$0x1]
        %v660 = vlaneseq
        %v661 = vshrl.u32 %v660, 7
        %v662 = vsub.s32 0, %v661
        %v663 = vrot.slane %v658, %v662
        %v666 = vsel %vm460, %v653, 0
        %668 = vmatprep.subr.mxu0 0.0
        %669 = vmatpush1.msra.mxu0 0.0
        %670 = vmatprep.subr.mxu0 0.0
        %671 = vmatpush1.msra.mxu0 0.0
        %672 = vmatprep.subr.mxu0 0.0
        %673 = vmatpush1.msra.mxu0 0.0
        %674 = vmatprep.subr.mxu0 0.0
        %675 = vmatpush1.msra.mxu0 0.0
        %676 = vmatprep.subr.mxu0 0.0
        %677 = vmatpush1.msra.mxu0 0.0
        %678 = vmatprep.subr.mxu0 0.0
        %679 = vmatpush1.msra.mxu0 0.0
        %680 = vmatprep.subr.mxu0 0.0
        %681 = vmatpush1.msra.mxu0 0.0
        %682 = vmatprep.subr.mxu0 0.0
        %683 = vmatpush1.msra.mxu0 0.0
        %684 = vmatprep.subr.mxu0 0.0
        %685 = vmatpush1.msra.mxu0 0.0
        %686 = vmatprep.subr.mxu0 0.0
        %687 = vmatpush1.msra.mxu0 0.0
        %688 = vmatprep.subr.mxu0 0.0
        %689 = vmatpush1.msra.mxu0 0.0
        %690 = vmatprep.subr.mxu0 0.0
        %691 = vmatpush1.msra.mxu0 0.0
        %692 = vmatprep.subr.mxu0 0.0
        %693 = vmatpush1.msra.mxu0 %v657
        %694 = vmatprep.subr.mxu0 0.0
        %695 = vmatpush1.msra.mxu0 %v656
        %696 = vmatprep.subr.mxu0 0.0
        %697 = vmatpush1.msra.mxu0 %v655
        %698 = vmatprep.subr.mxu0 0.0
        %699 = vmatpush1.msra.mxu0 %v654
        %700 = vmatprep.subr.mxu0 0.0
        %701 = vmatpush2.msra.mxu0 0.0
        %702 = vmatprep.subr.mxu0 0.0
        %703 = vmatpush2.msra.mxu0 0.0
        %704 = vmatprep.subr.mxu0 0.0
        %705 = vmatpush2.msra.mxu0 0.0
        %706 = vmatprep.subr.mxu0 0.0
        %707 = vmatpush2.msra.mxu0 0.0
        %708 = vmatprep.subr.mxu0 0.0
        %709 = vmatpush2.msra.mxu0 0.0
        %710 = vmatprep.subr.mxu0 0.0
        %711 = vmatpush2.msra.mxu0 0.0
        %712 = vmatprep.subr.mxu0 0.0
        %713 = vmatpush2.msra.mxu0 0.0
        %714 = vmatprep.subr.mxu0 0.0
        %715 = vmatpush2.msra.mxu0 0.0
        %716 = vmatprep.subr.mxu0 0.0
        %717 = vmatpush2.msra.mxu0 0.0
        %718 = vmatprep.subr.mxu0 0.0
        %719 = vmatpush2.msra.mxu0 0.0
        %720 = vmatprep.subr.mxu0 0.0
        %721 = vmatpush2.msra.mxu0 0.0
        %722 = vmatprep.subr.mxu0 0.0
        %723 = vmatpush2.msra.mxu0 0.0
        %724 = vmatprep.subr.mxu0 0.0
        %725 = vmatpush2.msra.mxu0 0.0
        %726 = vmatprep.subr.mxu0 0.0
        %727 = vmatpush2.msra.mxu0 0.0
        %728 = vmatprep.subr.mxu0 0.0
        %729 = vmatpush2.msra.mxu0 0.0
        %730 = vmatprep.subr.mxu0 0.0
        %731 = vmatpush2.msra.mxu0 0.0
        %732 = vmatprep.mubr.f32.mxu0 0.0
        %733 = vmatmul.mubr.f32.gmra.mxu0 %v666
        %v734 = vpop.f32.mrf.mxu0
        %v735 = vadd.f32 %v663, %v734
        %v736 = vpop.f32.mrf.mxu0
        %737 = vdwg.mxu0
        %v738 = vmax.f32 %v735, 0.0
        %v739 = vld [vmem:[%s9] sm:$0xff]
        %v740 = vld [vmem:[%s9 + $0x8] sm:$0xff]
        %v741 = vld [vmem:[%s9 + $0x10] sm:$0xff]
        %v742 = vld [vmem:[%s9 + $0x18] sm:$0xff]
        %v743 = vld [vmem:[%s9 + $0x20] sm:$0xff]
        %v744 = vld [vmem:[%s9 + $0x28] sm:$0xff]
        %v745 = vld [vmem:[%s9 + $0x30] sm:$0xff]
        %v746 = vld [vmem:[%s9 + $0x38] sm:$0xff]
        %v747 = vld [vmem:[%s10] sm:$0x1]
        %v749 = vlaneseq
        %v750 = vshrl.u32 %v749, 7
        %v751 = vsub.s32 0, %v750
        %v752 = vrot.slane %v747, %v751
        %vm754 = vcmask 523264
        %v756 = vsel %vm754, %v738, 0
        %758 = vmatprep.subr.mxu0 0.0
        %759 = vmatpush1.msra.mxu0 0.0
        %760 = vmatprep.subr.mxu0 0.0
        %761 = vmatpush1.msra.mxu0 0.0
        %762 = vmatprep.subr.mxu0 0.0
        %763 = vmatpush1.msra.mxu0 0.0
        %764 = vmatprep.subr.mxu0 0.0
        %765 = vmatpush1.msra.mxu0 0.0
        %766 = vmatprep.subr.mxu0 0.0
        %767 = vmatpush1.msra.mxu0 0.0
        %768 = vmatprep.subr.mxu0 0.0
        %769 = vmatpush1.msra.mxu0 0.0
        %770 = vmatprep.subr.mxu0 0.0
        %771 = vmatpush1.msra.mxu0 0.0
        %772 = vmatprep.subr.mxu0 0.0
        %773 = vmatpush1.msra.mxu0 0.0
        %774 = vmatprep.subr.mxu0 0.0
        %775 = vmatpush1.msra.mxu0 %v746
        %776 = vmatprep.subr.mxu0 0.0
        %777 = vmatpush1.msra.mxu0 %v745
        %778 = vmatprep.subr.mxu0 0.0
        %779 = vmatpush1.msra.mxu0 %v744
        %780 = vmatprep.subr.mxu0 0.0
        %781 = vmatpush1.msra.mxu0 %v743
        %782 = vmatprep.subr.mxu0 0.0
        %783 = vmatpush1.msra.mxu0 %v742
        %784 = vmatprep.subr.mxu0 0.0
        %785 = vmatpush1.msra.mxu0 %v741
        %786 = vmatprep.subr.mxu0 0.0
        %787 = vmatpush1.msra.mxu0 %v740
        %788 = vmatprep.subr.mxu0 0.0
        %789 = vmatpush1.msra.mxu0 %v739
        %790 = vmatprep.subr.mxu0 0.0
        %791 = vmatpush2.msra.mxu0 0.0
        %792 = vmatprep.subr.mxu0 0.0
        %793 = vmatpush2.msra.mxu0 0.0
        %794 = vmatprep.subr.mxu0 0.0
        %795 = vmatpush2.msra.mxu0 0.0
        %796 = vmatprep.subr.mxu0 0.0
        %797 = vmatpush2.msra.mxu0 0.0
        %798 = vmatprep.subr.mxu0 0.0
        %799 = vmatpush2.msra.mxu0 0.0
        %800 = vmatprep.subr.mxu0 0.0
        %801 = vmatpush2.msra.mxu0 0.0
        %802 = vmatprep.subr.mxu0 0.0
        %803 = vmatpush2.msra.mxu0 0.0
        %804 = vmatprep.subr.mxu0 0.0
        %805 = vmatpush2.msra.mxu0 0.0
        %806 = vmatprep.subr.mxu0 0.0
        %807 = vmatpush2.msra.mxu0 0.0
        %808 = vmatprep.subr.mxu0 0.0
        %809 = vmatpush2.msra.mxu0 0.0
        %810 = vmatprep.subr.mxu0 0.0
        %811 = vmatpush2.msra.mxu0 0.0
        %812 = vmatprep.subr.mxu0 0.0
        %813 = vmatpush2.msra.mxu0 0.0
        %814 = vmatprep.subr.mxu0 0.0
        %815 = vmatpush2.msra.mxu0 0.0
        %816 = vmatprep.subr.mxu0 0.0
        %817 = vmatpush2.msra.mxu0 0.0
        %818 = vmatprep.subr.mxu0 0.0
        %819 = vmatpush2.msra.mxu0 0.0
        %820 = vmatprep.subr.mxu0 0.0
        %821 = vmatpush2.msra.mxu0 0.0
        %822 = vmatprep.mubr.f32.mxu0 0.0
        %823 = vmatmul.mubr.f32.gmra.mxu0 %v756
        %v824 = vpop.f32.mrf.mxu0
        %v825 = vadd.f32 %v752, %v824
        %v826 = vpop.f32.mrf.mxu0
        %827 = vdwg.mxu0
        %v828 = vadd.f32 %v825, %v653
        %v829 = vld [vmem:[%s5] sm:$0x1]
        %v830 = vld [vmem:[%s6] sm:$0x1]
        %v831 = vsel %vm460, %v828, 0.0
        %832 = vadd.xlane.f32.xlu0 %v831
        %v833 = vpop.xlane.xlu0 %832
        %v834 = vmul.f32 %v833, %v629
        %v835 = vsub.f32 %v828, %v834
        %v836 = vmul.f32 %v835, %v835
        %v837 = vsel %vm460, %v836, 0.0
        %838 = vadd.xlane.f32.xlu0 %v837
        %v839 = vpop.xlane.xlu0 %838
        %v840 = vmul.f32 %v839, %v629
        %v841 = vadd.f32 %v840, 1e-05
        %v842 = vrsqrt.pop %v841
        %v843 = vmul.f32 %v835, %v842
        %v845 = vlaneseq
        %v846 = vshrl.u32 %v845, 7
        %v847 = vsub.s32 0, %v846
        %v848 = vrot.slane %v829, %v847
        %v850 = vmul.f32 %v843, %v848
        %v852 = vlaneseq
        %v853 = vshrl.u32 %v852, 7
        %v854 = vsub.s32 0, %v853
        %v855 = vrot.slane %v830, %v854
        %v857 = vadd.f32 %v850, %v855
        %859 = vset.pattern.permute.xlu0 0
        %860 = vperm.xlu0 %859, %v458
        %v861 = vpop.permute.xlu0 %860
        %v863 = vmul.f32 %v857, %v861
        %864 = vst.msk [vmem:[%s434] sm:$0xff] %vm460, %v863
        %865 = vst.msk [vmem:[%s441] sm:$0xff] %vm539, %v550
        %s866 = sand.u32 %s284, 1
        %s867 = scalar_lea.sflag [#allocation3], %s866
        %s868 = sand.u32 %s284, 1
        %s869 = smul.addr %s868, 8
        %s870 = scalar_lea.vmem [#allocation2], %s869
        %s871 = sand.u32 %s310, 1
        %s872 = scalar_lea.sflag [#allocation5], %s871
        %s873 = sand.u32 %s310, 1
        %s874 = smul.addr %s873, 8
        %s875 = scalar_lea.vmem [#allocation4], %s874
        // Predicated region
        $region65: #{tpu_custom_call.1} parent=63 // pred_check
          %p876 = pneg %p294
        $region66: #{tpu_custom_call.1} parent=63 // pred_check_branch
          %878 = sbr.rel (%p876) target = $region68
        $region67: #{tpu_custom_call.1} parent=63 // pred_region
          %s880 = ssub.s32 128, 128
          %881 = vsyncadd %s867, %s880
          %s882 = smul.addr %s30, 128
          %s883 = scalar_lea.hbm %s11, %s882
          %s885 = sshll.u32 %s870, 4
          %s886 = int_to_ptr.vmem [resolvable:$true] %s885
          %888 = dma.vmem_to_hbm [thread:$0]  %s886, 128, %s883, %s867
        $region68: #{tpu_custom_call.1} parent=63 // pred_fallthru
          _
        // Predicated region
        $region69: #{tpu_custom_call.1} parent=63 // pred_check
          %p889 = pneg %p320
        $region70: #{tpu_custom_call.1} parent=63 // pred_check_branch
          %891 = sbr.rel (%p889) target = $region72
        $region71: #{tpu_custom_call.1} parent=63 // pred_region
          %s893 = ssub.s32 128, 128
          %894 = vsyncadd %s872, %s893
          %s895 = smul.addr %s30, 128
          %s896 = scalar_lea.hbm %s12, %s895
          %s898 = sshll.u32 %s875, 4
          %s899 = int_to_ptr.vmem [resolvable:$true] %s898
          %901 = dma.vmem_to_hbm [thread:$0]  %s899, 128, %s896, %s872
        $region72: #{tpu_custom_call.1} parent=63 // pred_fallthru
          _
      $region64: #{tpu_custom_call.1} parent=5 // pred_fallthru
        _
      %p902 = scmp.le.s32.totalorder 2, %s25
      // Predicated region
      $region73: #{tpu_custom_call.1} parent=5 // pred_check
        %p903 = pneg %p902
      $region74: #{tpu_custom_call.1} parent=5 // pred_check_branch
        %905 = sbr.rel (%p903) target = $region76
      $region75: #{tpu_custom_call.1} parent=5 // pred_region
        %s906 = ssub.s32 %s25, 2
        // Predicated region
        $region77: #{tpu_custom_call.1} parent=75 // pred_check
          %p907 = pneg %p300
        $region78: #{tpu_custom_call.1} parent=75 // pred_check_branch
          %909 = sbr.rel (%p907) target = $region80
        $region79: #{tpu_custom_call.1} parent=75 // pred_region
          %s910 = sand.u32 %s285, 1
          %s911 = scalar_lea.sflag [#allocation3], %s910
          %s912 = sand.u32 %s285, 1
          %s913 = smul.addr %s912, 8
          %s914 = scalar_lea.vmem [#allocation2], %s913
          %915 = dma.done %s911, 128
        $region80: #{tpu_custom_call.1} parent=75 // pred_fallthru
          _
        // Predicated region
        $region81: #{tpu_custom_call.1} parent=75 // pred_check
          %p916 = pneg %p326
        $region82: #{tpu_custom_call.1} parent=75 // pred_check_branch
          %918 = sbr.rel (%p916) target = $region84
        $region83: #{tpu_custom_call.1} parent=75 // pred_region
          %s919 = sand.u32 %s311, 1
          %s920 = scalar_lea.sflag [#allocation5], %s919
          %s921 = sand.u32 %s311, 1
          %s922 = smul.addr %s921, 8
          %s923 = scalar_lea.vmem [#allocation4], %s922
          %924 = dma.done %s920, 128
        $region84: #{tpu_custom_call.1} parent=75 // pred_fallthru
          _
      $region76: #{tpu_custom_call.1} parent=5 // pred_fallthru
        _
    $region6: #{tpu_custom_call.1} parent=1 // loop_footer
      %s29 = sadd.s32 1, %s25
    $region7: #{tpu_custom_call.1} parent=1 // loop_footer_branch
      %24 = sbr.rel target = $region3
    $region8: #{tpu_custom_call.1} parent=1 // loop_exit
      _
    %925 = vsyncpa [#allocation3], 1
    %s926 = scalar_lea.sflag [#allocation3], 1
    %927 = vsyncpa %s926, 1
    %928 = vsyncpa [#allocation5], 1
    %s929 = scalar_lea.sflag [#allocation5], 1
    %930 = vsyncpa %s929, 1

</llo_original>
